<compile_context>
chip_gen: v5e
topology: v5e:2x2
jax: 0.10.0
libtpu: 0.0.40
codegen_flags: <defaults>
</compile_context>

<pallas_src>
import functools

import jax
import jax.numpy as jnp
from jax.experimental import pallas as pl
from jax.experimental.pallas import tpu as pltpu

LANES = 128  # pad latent (L*O) and property (P*T) feature dims to full lane width


def _segmented_softmax(x, width, ones_block):
    """Softmax over contiguous, `width`-aligned lane segments of a lane-dense x."""
    n = x.shape[-1]
    lane = jax.lax.broadcasted_iota(jnp.int32, x.shape, x.ndim - 1)
    pos = lane % width                      # position inside its segment
    neg_inf = jnp.full(x.shape, -jnp.inf, dtype=x.dtype)

    # Per-segment max: doubling-radius roll+max tree on the XLU; masks keep the
    # reduction from crossing segment boundaries (circular wrap is masked too).
    m = x
    s = 1
    while s < width:
        fwd = jnp.where(pos + s < width,
                        pltpu.roll(m, shift=n - s, axis=x.ndim - 1), neg_inf)
        bwd = jnp.where(pos >= s,
                        pltpu.roll(m, shift=s, axis=x.ndim - 1), neg_inf)
        m = jnp.maximum(m, jnp.maximum(fwd, bwd))
        s *= 2

    e = jnp.exp(x - m)
    # Per-segment sum broadcast back across the segment: one MXU matmul with a
    # block-diagonal ones matrix (idle MXU slot, no lane slicing).
    denom = jnp.dot(e, ones_block, preferred_element_type=jnp.float32)
    return e * pl.reciprocal(denom, approx=True)


def comp_encdec_kernel(x_ref, g_ref, we_ref, be_ref, ones_lat_ref,
                       wd_ref, bd_ref, ones_prop_ref, out_ref, *, O, T):
    # Fused encoder (1/temperature already folded into we/be/g by the wrapper).
    z = jnp.dot(x_ref[...], we_ref[...], preferred_element_type=jnp.float32)
    z = z + be_ref[...] + g_ref[...]                          # (TB, 128)
    # Soft gumbel-softmax per latent variable (segments of width O).
    logits = _segmented_softmax(z, O, ones_lat_ref[...])
    # Fused decoder (padded latent lanes hit zero rows of wd -> contribute 0).
    o = jnp.dot(logits, wd_ref[...], preferred_element_type=jnp.float32) + bd_ref[...]
    # Per-property softmax (segments of width T); lane-dense full-width store.
    out_ref[...] = _segmented_softmax(o, T, ones_prop_ref[...])


def _block_diag_ones(n, width):
    seg = jnp.arange(n) // width
    return (seg[:, None] == seg[None, :]).astype(jnp.float32)


def comp_encoder_decoder_forward(x, gumbel, temps, params, *, L, O, P, T,
                                 batch_tile=None):
    """Runs the fused Pallas kernel; returns output shaped [P, B, T]."""
    B = x.shape[0]
    PT, LO = P * T, L * O
    w1, b1, w2, b2, w3, b3, w4, b4 = params

    # ---- algebraic fusion of each Linear pair (exact: no activation between) ----
    W_enc = w1 @ w2                       # (PT, LO)
    b_enc = b1 @ w2 + b2                  # (1, LO)
    W_dec = w3 @ w4                       # (LO, PT)
    b_dec = b3 @ w4 + b4                  # (1, PT)

    # ---- fold 1/temperature per latent into encoder weights / bias / noise ----
    inv_t = jnp.repeat(1.0 / temps, O)[None, :]               # (1, LO)
    W_enc = W_enc * inv_t
    b_enc = b_enc * inv_t
    g = gumbel * inv_t

    # ---- zero-pad latent / property lane dims to 128 (lane-dense everywhere) ----
    W_enc_p = jnp.zeros((PT, LANES), jnp.float32).at[:, :LO].set(W_enc)
    b_enc_p = jnp.zeros((1, LANES), jnp.float32).at[:, :LO].set(b_enc)
    g_p = jnp.zeros((B, LANES), jnp.float32).at[:, :LO].set(g)
    W_dec_p = jnp.zeros((LANES, LANES), jnp.float32).at[:LO, :PT].set(W_dec)
    b_dec_p = jnp.zeros((1, LANES), jnp.float32).at[:, :PT].set(b_dec)
    ones_lat = _block_diag_ones(LANES, O)
    ones_prop = _block_diag_ones(LANES, T)

    tb = batch_tile or (B if B <= 512 else 512)
    assert B % tb == 0, "batch must be divisible by the batch tile"
    grid = (B // tb,)

    kern = functools.partial(comp_encdec_kernel, O=O, T=T)

    flops = 2 * B * (PT * LANES + 3 * LANES * LANES)
    bytes_accessed = 4 * (B * PT + 2 * B * LANES + PT * LANES
                          + 3 * LANES * LANES + 2 * LANES)

    out_pad = pl.pallas_call(
        kern,
        out_shape=jax.ShapeDtypeStruct((B, LANES), jnp.float32),
        grid=grid,
        in_specs=[
            pl.BlockSpec((tb, PT), lambda i: (i, 0)),         # x
            pl.BlockSpec((tb, LANES), lambda i: (i, 0)),      # gumbel (scaled+padded)
            pl.BlockSpec((PT, LANES), lambda i: (0, 0)),      # fused encoder W
            pl.BlockSpec((1, LANES), lambda i: (0, 0)),       # fused encoder b
            pl.BlockSpec((LANES, LANES), lambda i: (0, 0)),   # block-diag ones (latent)
            pl.BlockSpec((LANES, LANES), lambda i: (0, 0)),   # fused decoder W
            pl.BlockSpec((1, LANES), lambda i: (0, 0)),       # fused decoder b
            pl.BlockSpec((LANES, LANES), lambda i: (0, 0)),   # block-diag ones (property)
        ],
        out_specs=pl.BlockSpec((tb, LANES), lambda i: (i, 0)),
        compiler_params=pltpu.CompilerParams(
            dimension_semantics=("parallel",)),
        cost_estimate=pl.CostEstimate(
            flops=flops, transcendentals=4 * B * LANES,
            bytes_accessed=bytes_accessed),
    )(x, g_p, W_enc_p, b_enc_p, ones_lat, W_dec_p, b_dec_p, ones_prop)

    # glue: drop lane padding, view(B, P, T).permute(1, 0, 2) -> (P, B, T)
    return out_pad[:, :PT].reshape(B, P, T).transpose(1, 0, 2)


def _reference_forward(x, gumbel, temps, params, *, L, O, P, T):
    """Pure-JAX (unfused) reference for correctness checking."""
    w1, b1, w2, b2, w3, b3, w4, b4 = params
    B = x.shape[0]
    e = x @ w1 + b1
    z = (e @ w2 + b2).reshape(B, L, O)
    g = gumbel.reshape(B, L, O)
    y = jax.nn.softmax((z + g) / temps[None, :, None], axis=-1)
    d = y.reshape(B, L * O) @ w3 + b3
    o = (d @ w4 + b4).reshape(B, P, T)
    return jax.nn.softmax(o, axis=-1).transpose(1, 0, 2)


if __name__ == "__main__":
    # ---- config (small, consistent with the module) ----
    P = 4          # num_properties
    T = 8          # types_per_property
    L = 4          # num_latent_variables
    O = 8          # output_size
    Ee = 32        # embedding_size_encoder
    Ed = 32        # embedding_size_decoder
    B = 8          # batch
    temp_val = 0.66

    key = jax.random.PRNGKey(0)
    k = jax.random.split(key, 12)

    # ---- deterministic parameter init (Linear weights stored as [in, out]) ----
    def init_linear(kw, kb, fan_in, fan_out):
        bound = 1.0 / jnp.sqrt(fan_in)
        w = jax.random.uniform(kw, (fan_in, fan_out), jnp.float32, -bound, bound)
        b = jax.random.uniform(kb, (1, fan_out), jnp.float32, -bound, bound)
        return w, b

    w1, b1 = init_linear(k[0], k[1], P * T, Ee)     # encoder_embedding
    w2, b2 = init_linear(k[2], k[3], Ee, L * O)     # encoder_out
    w3, b3 = init_linear(k[4], k[5], L * O, Ed)     # decoder_embedding
    w4, b4 = init_linear(k[6], k[7], Ed, P * T)     # decoder_out
    params = (w1, b1, w2, b2, w3, b3, w4, b4)

    # ---- inputs: concatenated one-hot encodings of P properties ----
    prop_ids = jax.random.randint(k[8], (B, P), 0, T)
    x = jax.nn.one_hot(prop_ids, T, dtype=jnp.float32).reshape(B, P * T)

    # ---- pre-sampled gumbel noise (stochasticity lives outside the kernel) ----
    u = jax.random.uniform(k[9], (B, L * O), jnp.float32, 1e-9, 1.0)
    gumbel = -jnp.log(-jnp.log(u))

    temps = jnp.full((L,), temp_val, dtype=jnp.float32)

    out = comp_encoder_decoder_forward(x, gumbel, temps, params, L=L, O=O, P=P, T=T)
    out = jax.block_until_ready(out)

    ref = _reference_forward(x, gumbel, temps, params, L=L, O=O, P=P, T=T)
    assert out.shape == (P, B, T), out.shape
    # tolerance loosened vs v1: algebraic weight fusion + approx reciprocal
    assert jnp.allclose(out, ref, atol=2e-3, rtol=2e-3), "mismatch vs reference"

    print("KERNEL_OK")
</pallas_src>

<mosaic_0001>
module attributes {stable_mosaic.version = 11 : i64} {
  func.func @comp_encdec_kernel(%arg0: i32, %arg1: memref<8x32xf32, #tpu.memory_space<vmem>>, %arg2: memref<8x128xf32, #tpu.memory_space<vmem>>, %arg3: memref<32x128xf32, #tpu.memory_space<vmem>>, %arg4: memref<1x128xf32, #tpu.memory_space<vmem>>, %arg5: memref<128x128xf32, #tpu.memory_space<vmem>>, %arg6: memref<128x128xf32, #tpu.memory_space<vmem>>, %arg7: memref<1x128xf32, #tpu.memory_space<vmem>>, %arg8: memref<128x128xf32, #tpu.memory_space<vmem>>, %arg9: memref<8x128xf32, #tpu.memory_space<vmem>>) attributes {dimension_semantics = [#tpu.dimension_semantics<parallel>], iteration_bounds = array<i64: 1>, scalar_prefetch = 0 : i64, scratch_operands = 0 : i64, tpu.core_type = #tpu.core_type<tc>, window_params = [{transform_indices = @transform_0, window_bounds = array<i64: 8, 32>}, {transform_indices = @transform_1, window_bounds = array<i64: 8, 128>}, {pipeline_mode = #tpu.pipeline_mode<synchronous>, transform_indices = @transform_2, window_bounds = array<i64: 32, 128>}, {pipeline_mode = #tpu.pipeline_mode<synchronous>, transform_indices = @transform_3, window_bounds = array<i64: 1, 128>}, {pipeline_mode = #tpu.pipeline_mode<synchronous>, transform_indices = @transform_4, window_bounds = array<i64: 128, 128>}, {pipeline_mode = #tpu.pipeline_mode<synchronous>, transform_indices = @transform_5, window_bounds = array<i64: 128, 128>}, {pipeline_mode = #tpu.pipeline_mode<synchronous>, transform_indices = @transform_6, window_bounds = array<i64: 1, 128>}, {pipeline_mode = #tpu.pipeline_mode<synchronous>, transform_indices = @transform_7, window_bounds = array<i64: 128, 128>}, {transform_indices = @transform_8, window_bounds = array<i64: 8, 128>}]} {
    %c0 = arith.constant 0 : index
    %c0_0 = arith.constant 0 : index
    %0 = vector.load %arg1[%c0, %c0_0] : memref<8x32xf32, #tpu.memory_space<vmem>>, vector<8x32xf32>
    %c0_1 = arith.constant 0 : index
    %c0_2 = arith.constant 0 : index
    %1 = vector.load %arg3[%c0_1, %c0_2] : memref<32x128xf32, #tpu.memory_space<vmem>>, vector<32x128xf32>
    %cst = arith.constant dense<0.000000e+00> : vector<8x128xf32>
    %2 = tpu.matmul %0, %1, %cst {dimension_numbers = #tpu.dot_dimension_numbers<[1], [0], [0], [1], [0, 0, 1, 1], [], []>} : vector<8x32xf32>, vector<32x128xf32>, vector<8x128xf32> -> vector<8x128xf32>
    %c0_3 = arith.constant 0 : index
    %c0_4 = arith.constant 0 : index
    %3 = vector.load %arg4[%c0_3, %c0_4] : memref<1x128xf32, #tpu.memory_space<vmem>>, vector<1x128xf32>
    %4 = vector.broadcast %3 : vector<1x128xf32> to vector<8x128xf32>
    %5 = arith.addf %2, %4 : vector<8x128xf32>
    %c0_5 = arith.constant 0 : index
    %c0_6 = arith.constant 0 : index
    %6 = vector.load %arg2[%c0_5, %c0_6] : memref<8x128xf32, #tpu.memory_space<vmem>>, vector<8x128xf32>
    %7 = arith.addf %5, %6 : vector<8x128xf32>
    %c0_7 = arith.constant 0 : index
    %c0_8 = arith.constant 0 : index
    %8 = vector.load %arg5[%c0_7, %c0_8] : memref<128x128xf32, #tpu.memory_space<vmem>>, vector<128x128xf32>
    %9 = tpu.iota {dimensions = array<i32: 1>} : vector<8x128xi32>
    %c8_i32 = arith.constant 8 : i32
    %c0_i32 = arith.constant 0 : i32
    %10 = arith.cmpi eq, %c8_i32, %c0_i32 : i32
    %c1_i32 = arith.constant 1 : i32
    %11 = arith.select %10, %c1_i32, %c8_i32 : i32
    %12 = vector.broadcast %11 : i32 to vector<8x128xi32>
    %13 = arith.remsi %9, %12 : vector<8x128xi32>
    %c0_i32_9 = arith.constant 0 : i32
    %14 = vector.broadcast %c0_i32_9 : i32 to vector<8x128xi32>
    %15 = arith.cmpi ne, %13, %14 : vector<8x128xi32>
    %c0_i32_10 = arith.constant 0 : i32
    %16 = vector.broadcast %c0_i32_10 : i32 to vector<8x128xi32>
    %17 = arith.cmpi slt, %13, %16 : vector<8x128xi32>
    %c0_i32_11 = arith.constant 0 : i32
    %18 = arith.cmpi slt, %11, %c0_i32_11 : i32
    %19 = vector.broadcast %18 : i1 to vector<8x128xi1>
    %20 = vector.broadcast %19 : vector<8x128xi1> to vector<8x128xi1>
    %21 = arith.xori %17, %20 : vector<8x128xi1>
    %22 = arith.andi %21, %15 : vector<8x128xi1>
    %23 = vector.broadcast %11 : i32 to vector<8x128xi32>
    %24 = arith.addi %13, %23 : vector<8x128xi32>
    %25 = arith.select %22, %24, %13 : vector<8x128xi1>, vector<8x128xi32>
    %cst_12 = arith.constant 0xFF800000 : f32
    %26 = vector.broadcast %cst_12 : f32 to vector<8x128xf32>
    %c1_i32_13 = arith.constant 1 : i32
    %27 = vector.broadcast %c1_i32_13 : i32 to vector<8x128xi32>
    %28 = arith.addi %25, %27 : vector<8x128xi32>
    %c8_i32_14 = arith.constant 8 : i32
    %29 = vector.broadcast %c8_i32_14 : i32 to vector<8x128xi32>
    %30 = arith.cmpi slt, %28, %29 : vector<8x128xi32>
    %c127_i32 = arith.constant 127 : i32
    %31 = tpu.dynamic_rotate %7 by %c127_i32 dim 1 : vector<8x128xf32>, i32 -> vector<8x128xf32>
    %32 = arith.select %30, %31, %26 : vector<8x128xi1>, vector<8x128xf32>
    %c1_i32_15 = arith.constant 1 : i32
    %33 = vector.broadcast %c1_i32_15 : i32 to vector<8x128xi32>
    %34 = arith.cmpi sge, %25, %33 : vector<8x128xi32>
    %c1_i32_16 = arith.constant 1 : i32
    %35 = tpu.dynamic_rotate %7 by %c1_i32_16 dim 1 : vector<8x128xf32>, i32 -> vector<8x128xf32>
    %36 = arith.select %34, %35, %26 : vector<8x128xi1>, vector<8x128xf32>
    %37 = arith.maximumf %32, %36 : vector<8x128xf32>
    %38 = arith.maximumf %7, %37 : vector<8x128xf32>
    %c2_i32 = arith.constant 2 : i32
    %39 = vector.broadcast %c2_i32 : i32 to vector<8x128xi32>
    %40 = arith.addi %25, %39 : vector<8x128xi32>
    %c8_i32_17 = arith.constant 8 : i32
    %41 = vector.broadcast %c8_i32_17 : i32 to vector<8x128xi32>
    %42 = arith.cmpi slt, %40, %41 : vector<8x128xi32>
    %c126_i32 = arith.constant 126 : i32
    %43 = tpu.dynamic_rotate %38 by %c126_i32 dim 1 : vector<8x128xf32>, i32 -> vector<8x128xf32>
    %44 = arith.select %42, %43, %26 : vector<8x128xi1>, vector<8x128xf32>
    %c2_i32_18 = arith.constant 2 : i32
    %45 = vector.broadcast %c2_i32_18 : i32 to vector<8x128xi32>
    %46 = arith.cmpi sge, %25, %45 : vector<8x128xi32>
    %c2_i32_19 = arith.constant 2 : i32
    %47 = tpu.dynamic_rotate %38 by %c2_i32_19 dim 1 : vector<8x128xf32>, i32 -> vector<8x128xf32>
    %48 = arith.select %46, %47, %26 : vector<8x128xi1>, vector<8x128xf32>
    %49 = arith.maximumf %44, %48 : vector<8x128xf32>
    %50 = arith.maximumf %38, %49 : vector<8x128xf32>
    %c4_i32 = arith.constant 4 : i32
    %51 = vector.broadcast %c4_i32 : i32 to vector<8x128xi32>
    %52 = arith.addi %25, %51 : vector<8x128xi32>
    %c8_i32_20 = arith.constant 8 : i32
    %53 = vector.broadcast %c8_i32_20 : i32 to vector<8x128xi32>
    %54 = arith.cmpi slt, %52, %53 : vector<8x128xi32>
    %c124_i32 = arith.constant 124 : i32
    %55 = tpu.dynamic_rotate %50 by %c124_i32 dim 1 : vector<8x128xf32>, i32 -> vector<8x128xf32>
    %56 = arith.select %54, %55, %26 : vector<8x128xi1>, vector<8x128xf32>
    %c4_i32_21 = arith.constant 4 : i32
    %57 = vector.broadcast %c4_i32_21 : i32 to vector<8x128xi32>
    %58 = arith.cmpi sge, %25, %57 : vector<8x128xi32>
    %c4_i32_22 = arith.constant 4 : i32
    %59 = tpu.dynamic_rotate %50 by %c4_i32_22 dim 1 : vector<8x128xf32>, i32 -> vector<8x128xf32>
    %60 = arith.select %58, %59, %26 : vector<8x128xi1>, vector<8x128xf32>
    %61 = arith.maximumf %56, %60 : vector<8x128xf32>
    %62 = arith.maximumf %50, %61 : vector<8x128xf32>
    %63 = arith.subf %7, %62 : vector<8x128xf32>
    %64 = math.exp %63 : vector<8x128xf32>
    %cst_23 = arith.constant dense<0.000000e+00> : vector<8x128xf32>
    %65 = tpu.matmul %64, %8, %cst_23 {dimension_numbers = #tpu.dot_dimension_numbers<[1], [0], [0], [1], [0, 0, 1, 1], [], []>} : vector<8x128xf32>, vector<128x128xf32>, vector<8x128xf32> -> vector<8x128xf32>
    %66 = tpu.reciprocal %65 {approx = true} : vector<8x128xf32> -> vector<8x128xf32>
    %67 = arith.mulf %64, %66 : vector<8x128xf32>
    %c0_24 = arith.constant 0 : index
    %c0_25 = arith.constant 0 : index
    %68 = vector.load %arg6[%c0_24, %c0_25] : memref<128x128xf32, #tpu.memory_space<vmem>>, vector<128x128xf32>
    %cst_26 = arith.constant dense<0.000000e+00> : vector<8x128xf32>
    %69 = tpu.matmul %67, %68, %cst_26 {dimension_numbers = #tpu.dot_dimension_numbers<[1], [0], [0], [1], [0, 0, 1, 1], [], []>} : vector<8x128xf32>, vector<128x128xf32>, vector<8x128xf32> -> vector<8x128xf32>
    %c0_27 = arith.constant 0 : index
    %c0_28 = arith.constant 0 : index
    %70 = vector.load %arg7[%c0_27, %c0_28] : memref<1x128xf32, #tpu.memory_space<vmem>>, vector<1x128xf32>
    %71 = vector.broadcast %70 : vector<1x128xf32> to vector<8x128xf32>
    %72 = arith.addf %69, %71 : vector<8x128xf32>
    %c0_29 = arith.constant 0 : index
    %c0_30 = arith.constant 0 : index
    %73 = vector.load %arg8[%c0_29, %c0_30] : memref<128x128xf32, #tpu.memory_space<vmem>>, vector<128x128xf32>
    %74 = tpu.iota {dimensions = array<i32: 1>} : vector<8x128xi32>
    %c8_i32_31 = arith.constant 8 : i32
    %c0_i32_32 = arith.constant 0 : i32
    %75 = arith.cmpi eq, %c8_i32_31, %c0_i32_32 : i32
    %c1_i32_33 = arith.constant 1 : i32
    %76 = arith.select %75, %c1_i32_33, %c8_i32_31 : i32
    %77 = vector.broadcast %76 : i32 to vector<8x128xi32>
    %78 = arith.remsi %74, %77 : vector<8x128xi32>
    %c0_i32_34 = arith.constant 0 : i32
    %79 = vector.broadcast %c0_i32_34 : i32 to vector<8x128xi32>
    %80 = arith.cmpi ne, %78, %79 : vector<8x128xi32>
    %c0_i32_35 = arith.constant 0 : i32
    %81 = vector.broadcast %c0_i32_35 : i32 to vector<8x128xi32>
    %82 = arith.cmpi slt, %78, %81 : vector<8x128xi32>
    %c0_i32_36 = arith.constant 0 : i32
    %83 = arith.cmpi slt, %76, %c0_i32_36 : i32
    %84 = vector.broadcast %83 : i1 to vector<8x128xi1>
    %85 = vector.broadcast %84 : vector<8x128xi1> to vector<8x128xi1>
    %86 = arith.xori %82, %85 : vector<8x128xi1>
    %87 = arith.andi %86, %80 : vector<8x128xi1>
    %88 = vector.broadcast %76 : i32 to vector<8x128xi32>
    %89 = arith.addi %78, %88 : vector<8x128xi32>
    %90 = arith.select %87, %89, %78 : vector<8x128xi1>, vector<8x128xi32>
    %cst_37 = arith.constant 0xFF800000 : f32
    %91 = vector.broadcast %cst_37 : f32 to vector<8x128xf32>
    %c1_i32_38 = arith.constant 1 : i32
    %92 = vector.broadcast %c1_i32_38 : i32 to vector<8x128xi32>
    %93 = arith.addi %90, %92 : vector<8x128xi32>
    %c8_i32_39 = arith.constant 8 : i32
    %94 = vector.broadcast %c8_i32_39 : i32 to vector<8x128xi32>
    %95 = arith.cmpi slt, %93, %94 : vector<8x128xi32>
    %c127_i32_40 = arith.constant 127 : i32
    %96 = tpu.dynamic_rotate %72 by %c127_i32_40 dim 1 : vector<8x128xf32>, i32 -> vector<8x128xf32>
    %97 = arith.select %95, %96, %91 : vector<8x128xi1>, vector<8x128xf32>
    %c1_i32_41 = arith.constant 1 : i32
    %98 = vector.broadcast %c1_i32_41 : i32 to vector<8x128xi32>
    %99 = arith.cmpi sge, %90, %98 : vector<8x128xi32>
    %c1_i32_42 = arith.constant 1 : i32
    %100 = tpu.dynamic_rotate %72 by %c1_i32_42 dim 1 : vector<8x128xf32>, i32 -> vector<8x128xf32>
    %101 = arith.select %99, %100, %91 : vector<8x128xi1>, vector<8x128xf32>
    %102 = arith.maximumf %97, %101 : vector<8x128xf32>
    %103 = arith.maximumf %72, %102 : vector<8x128xf32>
    %c2_i32_43 = arith.constant 2 : i32
    %104 = vector.broadcast %c2_i32_43 : i32 to vector<8x128xi32>
    %105 = arith.addi %90, %104 : vector<8x128xi32>
    %c8_i32_44 = arith.constant 8 : i32
    %106 = vector.broadcast %c8_i32_44 : i32 to vector<8x128xi32>
    %107 = arith.cmpi slt, %105, %106 : vector<8x128xi32>
    %c126_i32_45 = arith.constant 126 : i32
    %108 = tpu.dynamic_rotate %103 by %c126_i32_45 dim 1 : vector<8x128xf32>, i32 -> vector<8x128xf32>
    %109 = arith.select %107, %108, %91 : vector<8x128xi1>, vector<8x128xf32>
    %c2_i32_46 = arith.constant 2 : i32
    %110 = vector.broadcast %c2_i32_46 : i32 to vector<8x128xi32>
    %111 = arith.cmpi sge, %90, %110 : vector<8x128xi32>
    %c2_i32_47 = arith.constant 2 : i32
    %112 = tpu.dynamic_rotate %103 by %c2_i32_47 dim 1 : vector<8x128xf32>, i32 -> vector<8x128xf32>
    %113 = arith.select %111, %112, %91 : vector<8x128xi1>, vector<8x128xf32>
    %114 = arith.maximumf %109, %113 : vector<8x128xf32>
    %115 = arith.maximumf %103, %114 : vector<8x128xf32>
    %c4_i32_48 = arith.constant 4 : i32
    %116 = vector.broadcast %c4_i32_48 : i32 to vector<8x128xi32>
    %117 = arith.addi %90, %116 : vector<8x128xi32>
    %c8_i32_49 = arith.constant 8 : i32
    %118 = vector.broadcast %c8_i32_49 : i32 to vector<8x128xi32>
    %119 = arith.cmpi slt, %117, %118 : vector<8x128xi32>
    %c124_i32_50 = arith.constant 124 : i32
    %120 = tpu.dynamic_rotate %115 by %c124_i32_50 dim 1 : vector<8x128xf32>, i32 -> vector<8x128xf32>
    %121 = arith.select %119, %120, %91 : vector<8x128xi1>, vector<8x128xf32>
    %c4_i32_51 = arith.constant 4 : i32
    %122 = vector.broadcast %c4_i32_51 : i32 to vector<8x128xi32>
    %123 = arith.cmpi sge, %90, %122 : vector<8x128xi32>
    %c4_i32_52 = arith.constant 4 : i32
    %124 = tpu.dynamic_rotate %115 by %c4_i32_52 dim 1 : vector<8x128xf32>, i32 -> vector<8x128xf32>
    %125 = arith.select %123, %124, %91 : vector<8x128xi1>, vector<8x128xf32>
    %126 = arith.maximumf %121, %125 : vector<8x128xf32>
    %127 = arith.maximumf %115, %126 : vector<8x128xf32>
    %128 = arith.subf %72, %127 : vector<8x128xf32>
    %129 = math.exp %128 : vector<8x128xf32>
    %cst_53 = arith.constant dense<0.000000e+00> : vector<8x128xf32>
    %130 = tpu.matmul %129, %73, %cst_53 {dimension_numbers = #tpu.dot_dimension_numbers<[1], [0], [0], [1], [0, 0, 1, 1], [], []>} : vector<8x128xf32>, vector<128x128xf32>, vector<8x128xf32> -> vector<8x128xf32>
    %131 = tpu.reciprocal %130 {approx = true} : vector<8x128xf32> -> vector<8x128xf32>
    %132 = arith.mulf %129, %131 : vector<8x128xf32>
    %c0_54 = arith.constant 0 : index
    %c0_55 = arith.constant 0 : index
    %133 = vector.load %arg9[%c0_54, %c0_55] : memref<8x128xf32, #tpu.memory_space<vmem>>, vector<8x128xf32>
    tpu.vector_store %arg9[%c0_54, %c0_55], %132 {strides = array<i32>} : memref<8x128xf32, #tpu.memory_space<vmem>>, vector<8x128xf32>,
    return
  }
  func.func @transform_0(%arg0: i32) -> (i32, i32) {
    %c0_i32 = arith.constant 0 : i32
    %c0_i32_0 = arith.constant 0 : i32
    return %arg0, %c0_i32 : i32, i32
  }
  func.func @transform_1(%arg0: i32) -> (i32, i32) {
    %c0_i32 = arith.constant 0 : i32
    %c0_i32_0 = arith.constant 0 : i32
    return %arg0, %c0_i32 : i32, i32
  }
  func.func @transform_2(%arg0: i32) -> (i32, i32) {
    %c0_i32 = arith.constant 0 : i32
    %c0_i32_0 = arith.constant 0 : i32
    %c0_i32_1 = arith.constant 0 : i32
    return %c0_i32, %c0_i32_0 : i32, i32
  }
  func.func @transform_3(%arg0: i32) -> (i32, i32) {
    %c0_i32 = arith.constant 0 : i32
    %c0_i32_0 = arith.constant 0 : i32
    %c0_i32_1 = arith.constant 0 : i32
    return %c0_i32, %c0_i32_0 : i32, i32
  }
  func.func @transform_4(%arg0: i32) -> (i32, i32) {
    %c0_i32 = arith.constant 0 : i32
    %c0_i32_0 = arith.constant 0 : i32
    %c0_i32_1 = arith.constant 0 : i32
    return %c0_i32, %c0_i32_0 : i32, i32
  }
  func.func @transform_5(%arg0: i32) -> (i32, i32) {
    %c0_i32 = arith.constant 0 : i32
    %c0_i32_0 = arith.constant 0 : i32
    %c0_i32_1 = arith.constant 0 : i32
    return %c0_i32, %c0_i32_0 : i32, i32
  }
  func.func @transform_6(%arg0: i32) -> (i32, i32) {
    %c0_i32 = arith.constant 0 : i32
    %c0_i32_0 = arith.constant 0 : i32
    %c0_i32_1 = arith.constant 0 : i32
    return %c0_i32, %c0_i32_0 : i32, i32
  }
  func.func @transform_7(%arg0: i32) -> (i32, i32) {
    %c0_i32 = arith.constant 0 : i32
    %c0_i32_0 = arith.constant 0 : i32
    %c0_i32_1 = arith.constant 0 : i32
    return %c0_i32, %c0_i32_0 : i32, i32
  }
  func.func @transform_8(%arg0: i32) -> (i32, i32) {
    %c0_i32 = arith.constant 0 : i32
    %c0_i32_0 = arith.constant 0 : i32
    return %arg0, %c0_i32 : i32, i32
  }
}

</mosaic_0001>

<llo_original>
// kernel: tpu_custom_call.1
$region0: #{tpu_custom_call.1}
  #allocation0 [shape = 'u32[]', space=smem, size = 0x4, offset = 0x4, fixed_abs, tag = 'smem constant byte address 0x4 - core index']
  #allocation1 [shape = 'u32[72,128]{1,0:T(1,128)}', space=vmem, size = 0x9000, scoped, tag = 'internal scratch']
  %s0 = inlined_call_operand.hbm [shape: f32[8,32], index: 0, kind: input, shape index: {}]
  %s1 = inlined_call_operand.hbm [shape: f32[8,128], index: 1, kind: input, shape index: {}]
  %s2 = inlined_call_operand.hbm [shape: f32[32,128], index: 2, kind: input, shape index: {}]
  %s3 = inlined_call_operand.vmem [shape: f32[1,128], index: 3, kind: input, shape index: {}]
  %s4 = inlined_call_operand.hbm [shape: f32[128,128], index: 4, kind: input, shape index: {}]
  %s5 = inlined_call_operand.hbm [shape: f32[128,128], index: 5, kind: input, shape index: {}]
  %s6 = inlined_call_operand.vmem [shape: f32[1,128], index: 6, kind: input, shape index: {}]
  %s7 = inlined_call_operand.hbm [shape: f32[128,128], index: 7, kind: input, shape index: {}]
  %s8 = inlined_call_operand.hbm [shape: f32[8,128], index: 8, kind: output, shape index: {}]
  %s9 = sld [smem:[#allocation0]]
  $region66: #{tpu_custom_call.1} parent=0
    _
  %s11 = ssub.s32 1, %s9
  %s12 = scalar_select 0, %s11, %s9
  $region1: #{tpu_custom_call.1} parent=0
    #allocation2 [shape = 'u8[4096]{0}', space=vmem, size = 0x1000, scoped, tag = 'input window, operand 0, single buffered']
    #allocation3 [shape = 's32[1]{0}', space=sflag, size = 0x4, scoped, tag = 'scoped memory for tpu_custom_call.1']
    #allocation4 [shape = 's32[1]{0}', space=sflag, size = 0x4, scoped, tag = 'scoped memory for tpu_custom_call.1']
    #allocation5 [shape = 'u8[4096]{0}', space=vmem, size = 0x1000, scoped, tag = 'input window, operand 1, single buffered']
    #allocation6 [shape = 's32[1]{0}', space=sflag, size = 0x4, scoped, tag = 'scoped memory for tpu_custom_call.1']
    #allocation7 [shape = 'u8[16384]{0}', space=vmem, size = 0x4000, scoped, tag = 'input window, operand 2, single buffered']
    #allocation8 [shape = 'u8[65536]{0}', space=vmem, size = 0x10000, scoped, tag = 'input window, operand 4, single buffered']
    #allocation9 [shape = 's32[1]{0}', space=sflag, size = 0x4, scoped, tag = 'scoped memory for tpu_custom_call.1']
    #allocation10 [shape = 'u8[65536]{0}', space=vmem, size = 0x10000, scoped, tag = 'input window, operand 5, single buffered']
    #allocation11 [shape = 'u8[65536]{0}', space=vmem, size = 0x10000, scoped, tag = 'input window, operand 7, single buffered']
    #allocation12 [shape = 's32[1]{0}', space=sflag, size = 0x4, scoped, tag = 'scoped memory for tpu_custom_call.1']
    #allocation13 [shape = 'u8[4096]{0}', space=vmem, size = 0x1000, scoped, tag = 'output window, operand 0, single buffered']
    %13 = vsyncpa [#allocation3], 0
    %14 = vsyncpa [#allocation6], 0
    %15 = vsyncpa [#allocation9], 0
    %16 = vsyncpa [#allocation12], 0
    %17 = vsyncpa [#allocation4], 0
    // Predicated region
    $region2: #{tpu_custom_call.1} parent=1 // pred_check
      _
    $region3: #{tpu_custom_call.1} parent=1 // pred_check_branch
      %19 = sbr.rel (0) target = $region5
    $region4: #{tpu_custom_call.1} parent=1 // pred_region
      %21 = vsyncadd [#allocation3], 0
      %s23 = sshll.u32 %s0, 4
      %s24 = int_to_ptr.hbm [resolvable:$true] %s23
      %s25 = sshll.u32 [#allocation2], 4
      %s26 = int_to_ptr.vmem [resolvable:$true] %s25
      %28 = dma.hbm_to_vmem [thread:$0]  %s24, 128, %s26, [#allocation3]
    $region5: #{tpu_custom_call.1} parent=1 // pred_fallthru
      _
    // Predicated region
    $region6: #{tpu_custom_call.1} parent=1 // pred_check
      _
    $region7: #{tpu_custom_call.1} parent=1 // pred_check_branch
      %30 = sbr.rel (0) target = $region9
    $region8: #{tpu_custom_call.1} parent=1 // pred_region
      %32 = vsyncadd [#allocation6], 0
      %s34 = sshll.u32 %s1, 4
      %s35 = int_to_ptr.hbm [resolvable:$true] %s34
      %s36 = sshll.u32 [#allocation5], 4
      %s37 = int_to_ptr.vmem [resolvable:$true] %s36
      %39 = dma.hbm_to_vmem [thread:$0]  %s35, 128, %s37, [#allocation6]
    $region9: #{tpu_custom_call.1} parent=1 // pred_fallthru
      _
    // Predicated region
    $region10: #{tpu_custom_call.1} parent=1 // pred_check
      _
    $region11: #{tpu_custom_call.1} parent=1 // pred_check_branch
      %41 = sbr.rel (0) target = $region13
    $region12: #{tpu_custom_call.1} parent=1 // pred_region
      %43 = vsyncadd [#allocation6], 0
      %s44 = sshll.u32 %s2, 4
      %s45 = int_to_ptr.hbm [resolvable:$true] %s44
      %s46 = sshll.u32 [#allocation7], 4
      %s47 = int_to_ptr.vmem [resolvable:$true] %s46
      %52 = dma.hbm_to_vmem [thread:$0]  %s45, 512, %s47, [#allocation6], 128, 128, 8
    $region13: #{tpu_custom_call.1} parent=1 // pred_fallthru
      _
    // Predicated region
    $region14: #{tpu_custom_call.1} parent=1 // pred_check
      _
    $region15: #{tpu_custom_call.1} parent=1 // pred_check_branch
      %54 = sbr.rel (0) target = $region17
    $region16: #{tpu_custom_call.1} parent=1 // pred_region
      _
    $region17: #{tpu_custom_call.1} parent=1 // pred_fallthru
      _
    // Predicated region
    $region18: #{tpu_custom_call.1} parent=1 // pred_check
      _
    $region19: #{tpu_custom_call.1} parent=1 // pred_check_branch
      %56 = sbr.rel (0) target = $region21
    $region20: #{tpu_custom_call.1} parent=1 // pred_region
      %58 = vsyncadd [#allocation9], 0
      %s59 = sshll.u32 %s4, 4
      %s60 = int_to_ptr.hbm [resolvable:$true] %s59
      %s61 = sshll.u32 [#allocation8], 4
      %s62 = int_to_ptr.vmem [resolvable:$true] %s61
      %67 = dma.hbm_to_vmem [thread:$0]  %s60, 2048, %s62, [#allocation9], 128, 128, 8
    $region21: #{tpu_custom_call.1} parent=1 // pred_fallthru
      _
    // Predicated region
    $region22: #{tpu_custom_call.1} parent=1 // pred_check
      _
    $region23: #{tpu_custom_call.1} parent=1 // pred_check_branch
      %69 = sbr.rel (0) target = $region25
    $region24: #{tpu_custom_call.1} parent=1 // pred_region
      %71 = vsyncadd [#allocation9], 0
      %s72 = sshll.u32 %s5, 4
      %s73 = int_to_ptr.hbm [resolvable:$true] %s72
      %s74 = sshll.u32 [#allocation10], 4
      %s75 = int_to_ptr.vmem [resolvable:$true] %s74
      %80 = dma.hbm_to_vmem [thread:$0]  %s73, 2048, %s75, [#allocation9], 128, 128, 8
    $region25: #{tpu_custom_call.1} parent=1 // pred_fallthru
      _
    // Predicated region
    $region26: #{tpu_custom_call.1} parent=1 // pred_check
      _
    $region27: #{tpu_custom_call.1} parent=1 // pred_check_branch
      %82 = sbr.rel (0) target = $region29
    $region28: #{tpu_custom_call.1} parent=1 // pred_region
      _
    $region29: #{tpu_custom_call.1} parent=1 // pred_fallthru
      _
    // Predicated region
    $region30: #{tpu_custom_call.1} parent=1 // pred_check
      _
    $region31: #{tpu_custom_call.1} parent=1 // pred_check_branch
      %84 = sbr.rel (0) target = $region33
    $region32: #{tpu_custom_call.1} parent=1 // pred_region
      %86 = vsyncadd [#allocation12], 0
      %s87 = sshll.u32 %s7, 4
      %s88 = int_to_ptr.hbm [resolvable:$true] %s87
      %s89 = sshll.u32 [#allocation11], 4
      %s90 = int_to_ptr.vmem [resolvable:$true] %s89
      %95 = dma.hbm_to_vmem [thread:$0]  %s88, 2048, %s90, [#allocation12], 128, 128, 8
    $region33: #{tpu_custom_call.1} parent=1 // pred_fallthru
      _
    // Predicated region
    $region34: #{tpu_custom_call.1} parent=1 // pred_check
      _
    $region35: #{tpu_custom_call.1} parent=1 // pred_check_branch
      %97 = sbr.rel (0) target = $region37
    $region36: #{tpu_custom_call.1} parent=1 // pred_region
      %99 = dma.done [#allocation3], 128
    $region37: #{tpu_custom_call.1} parent=1 // pred_fallthru
      _
    // Predicated region
    $region38: #{tpu_custom_call.1} parent=1 // pred_check
      _
    $region39: #{tpu_custom_call.1} parent=1 // pred_check_branch
      %101 = sbr.rel (0) target = $region41
    $region40: #{tpu_custom_call.1} parent=1 // pred_region
      %103 = dma.done [#allocation6], 128
    $region41: #{tpu_custom_call.1} parent=1 // pred_fallthru
      _
    // Predicated region
    $region42: #{tpu_custom_call.1} parent=1 // pred_check
      _
    $region43: #{tpu_custom_call.1} parent=1 // pred_check_branch
      %105 = sbr.rel (0) target = $region45
    $region44: #{tpu_custom_call.1} parent=1 // pred_region
      %107 = dma.done [#allocation6], 512
    $region45: #{tpu_custom_call.1} parent=1 // pred_fallthru
      _
    // Predicated region
    $region46: #{tpu_custom_call.1} parent=1 // pred_check
      _
    $region47: #{tpu_custom_call.1} parent=1 // pred_check_branch
      %109 = sbr.rel (0) target = $region49
    $region48: #{tpu_custom_call.1} parent=1 // pred_region
      %111 = dma.done [#allocation9], 2048
    $region49: #{tpu_custom_call.1} parent=1 // pred_fallthru
      _
    // Predicated region
    $region50: #{tpu_custom_call.1} parent=1 // pred_check
      _
    $region51: #{tpu_custom_call.1} parent=1 // pred_check_branch
      %113 = sbr.rel (0) target = $region53
    $region52: #{tpu_custom_call.1} parent=1 // pred_region
      %115 = dma.done [#allocation9], 2048
    $region53: #{tpu_custom_call.1} parent=1 // pred_fallthru
      _
    // Predicated region
    $region54: #{tpu_custom_call.1} parent=1 // pred_check
      _
    $region55: #{tpu_custom_call.1} parent=1 // pred_check_branch
      %117 = sbr.rel (0) target = $region57
    $region56: #{tpu_custom_call.1} parent=1 // pred_region
      %119 = dma.done [#allocation12], 2048
    $region57: #{tpu_custom_call.1} parent=1 // pred_fallthru
      _
    %v120 = vld [vmem:[#allocation2] sm:$0xff]
    %v121 = vld [vmem:[#allocation7] sm:$0xff]
    %v122 = vld [vmem:[#allocation7 + $0x8] sm:$0xff]
    %v123 = vld [vmem:[#allocation7 + $0x10] sm:$0xff]
    %v124 = vld [vmem:[#allocation7 + $0x18] sm:$0xff]
    %v125 = vld [vmem:[%s3] sm:$0x1]
    %v127 = vperm.slane %v125, 0
    %vm129 = vcmask 261120
    %v131 = vsel %vm129, %v120, 0
    %133 = vmatpush.msra.mxu0 0.0
    %134 = vmatpush.msra.mxu0 0.0
    %135 = vmatpush.msra.mxu0 0.0
    %136 = vmatpush.msra.mxu0 0.0
    %137 = vmatpush.msra.mxu0 0.0
    %138 = vmatpush.msra.mxu0 0.0
    %139 = vmatpush.msra.mxu0 0.0
    %140 = vmatpush.msra.mxu0 0.0
    %141 = vmatpush.msra.mxu0 0.0
    %142 = vmatpush.msra.mxu0 0.0
    %143 = vmatpush.msra.mxu0 0.0
    %144 = vmatpush.msra.mxu0 0.0
    %145 = vmatpush.msra.mxu0 %v124
    %146 = vmatpush.msra.mxu0 %v123
    %147 = vmatpush.msra.mxu0 %v122
    %148 = vmatpush.msra.mxu0 %v121
    %149 = vmatmul.f32.gmra.mxu0 %v131
    %v150 = vpop.f32.mrf.mxu0
    %v151 = vadd.f32 %v127, %v150
    %152 = vdwg.mxu0
    %v153 = vld [vmem:[#allocation5] sm:$0xff]
    %v154 = vadd.f32 %v151, %v153
    %v155 = vld [vmem:[#allocation8] sm:$0xff]
    %v156 = vld [vmem:[#allocation8 + $0x8] sm:$0xff]
    %v157 = vld [vmem:[#allocation8 + $0x10] sm:$0xff]
    %v158 = vld [vmem:[#allocation8 + $0x18] sm:$0xff]
    %v159 = vld [vmem:[#allocation8 + $0x20] sm:$0xff]
    %v160 = vld [vmem:[#allocation8 + $0x28] sm:$0xff]
    %v161 = vld [vmem:[#allocation8 + $0x30] sm:$0xff]
    %v162 = vld [vmem:[#allocation8 + $0x38] sm:$0xff]
    %v163 = vld [vmem:[#allocation8 + $0x40] sm:$0xff]
    %v164 = vld [vmem:[#allocation8 + $0x48] sm:$0xff]
    %v165 = vld [vmem:[#allocation8 + $0x50] sm:$0xff]
    %v166 = vld [vmem:[#allocation8 + $0x58] sm:$0xff]
    %v167 = vld [vmem:[#allocation8 + $0x60] sm:$0xff]
    %v168 = vld [vmem:[#allocation8 + $0x68] sm:$0xff]
    %v169 = vld [vmem:[#allocation8 + $0x70] sm:$0xff]
    %v170 = vld [vmem:[#allocation8 + $0x78] sm:$0xff]
    %v171 = vlaneseq
    %v172 = vand.u32 %v171, 127
    %vm173 = vcmp.lt.s32.totalorder %v172, 0
    %v174 = vsub.s32 0, %v172
    %v175 = vsel %vm173, %v174, %v172
    %v176 = vshrl.u32 %v175, 3
    %v177 = vand.u32 %v175, 7
    %v178 = vsub.s32 0, %v177
    %v179 = vsel %vm173, %v178, %v177
    %vm180 = vcmp.ne.s32.totalorder %v179, 0
    %vm181 = vcmp.lt.s32.totalorder %v179, 0
    %vm182 = vmand %vm181, %vm180
    %v183 = vadd.s32 %v179, 8
    %v184 = vsel %vm182, %v183, %v179
    %v185 = vadd.s32 %v184, 1
    %vm186 = vcmp.lt.s32.totalorder %v185, 8
    %187 = vrot.lane.b32.xlu0 %v154, 127
    %v188 = vpop.permute.xlu0 %187
    %v189 = vsel %vm186, %v188, -inf
    %vm190 = vcmp.ge.s32.totalorder %v184, 1
    %191 = vrot.lane.b32.xlu0 %v154, 1
    %v192 = vpop.permute.xlu0 %191
    %v193 = vsel %vm190, %v192, -inf
    %v194 = vmax.f32 %v189, %v193
    %v195 = vmax.f32 %v154, %v194
    %v196 = vadd.s32 %v184, 2
    %vm197 = vcmp.lt.s32.totalorder %v196, 8
    %198 = vrot.lane.b32.xlu0 %v195, 126
    %v199 = vpop.permute.xlu0 %198
    %v200 = vsel %vm197, %v199, -inf
    %vm201 = vcmp.ge.s32.totalorder %v184, 2
    %202 = vrot.lane.b32.xlu0 %v195, 2
    %v203 = vpop.permute.xlu0 %202
    %v204 = vsel %vm201, %v203, -inf
    %v205 = vmax.f32 %v200, %v204
    %v206 = vmax.f32 %v195, %v205
    %v207 = vadd.s32 %v184, 4
    %vm208 = vcmp.lt.s32.totalorder %v207, 8
    %209 = vrot.lane.b32.xlu0 %v206, 124
    %v210 = vpop.permute.xlu0 %209
    %v211 = vsel %vm208, %v210, -inf
    %vm212 = vcmp.ge.s32.totalorder %v184, 4
    %213 = vrot.lane.b32.xlu0 %v206, 4
    %v214 = vpop.permute.xlu0 %213
    %v215 = vsel %vm212, %v214, -inf
    %v216 = vmax.f32 %v211, %v215
    %v217 = vmax.f32 %v206, %v216
    %v218 = vsub.f32 %v154, %v217
    %v219 = vmul.f32 %v218, 1.442695
    %v220 = vpow.pop %v219
    %221 = vmatpush.msra.mxu0 %v170
    %222 = vmatpush.msra.mxu0 %v169
    %223 = vmatpush.msra.mxu0 %v168
    %224 = vmatpush.msra.mxu0 %v167
    %225 = vmatpush.msra.mxu0 %v166
    %226 = vmatpush.msra.mxu0 %v165
    %227 = vmatpush.msra.mxu0 %v164
    %228 = vmatpush.msra.mxu0 %v163
    %229 = vmatpush.msra.mxu0 %v162
    %230 = vmatpush.msra.mxu0 %v161
    %231 = vmatpush.msra.mxu0 %v160
    %232 = vmatpush.msra.mxu0 %v159
    %233 = vmatpush.msra.mxu0 %v158
    %234 = vmatpush.msra.mxu0 %v157
    %235 = vmatpush.msra.mxu0 %v156
    %236 = vmatpush.msra.mxu0 %v155
    %237 = vmatmul.f32.gmra.mxu0 %v220
    %v238 = vpop.f32.mrf.mxu0
    %v239 = vadd.f32 0.0, %v238
    %240 = vdwg.mxu0
    %v241 = vrcp.pop %v239
    %v242 = vmul.f32 %v220, %v241
    %v243 = vld [vmem:[#allocation10] sm:$0xff]
    %v244 = vld [vmem:[#allocation10 + $0x8] sm:$0xff]
    %v245 = vld [vmem:[#allocation10 + $0x10] sm:$0xff]
    %v246 = vld [vmem:[#allocation10 + $0x18] sm:$0xff]
    %v247 = vld [vmem:[#allocation10 + $0x20] sm:$0xff]
    %v248 = vld [vmem:[#allocation10 + $0x28] sm:$0xff]
    %v249 = vld [vmem:[#allocation10 + $0x30] sm:$0xff]
    %v250 = vld [vmem:[#allocation10 + $0x38] sm:$0xff]
    %v251 = vld [vmem:[#allocation10 + $0x40] sm:$0xff]
    %v252 = vld [vmem:[#allocation10 + $0x48] sm:$0xff]
    %v253 = vld [vmem:[#allocation10 + $0x50] sm:$0xff]
    %v254 = vld [vmem:[#allocation10 + $0x58] sm:$0xff]
    %v255 = vld [vmem:[#allocation10 + $0x60] sm:$0xff]
    %v256 = vld [vmem:[#allocation10 + $0x68] sm:$0xff]
    %v257 = vld [vmem:[#allocation10 + $0x70] sm:$0xff]
    %v258 = vld [vmem:[#allocation10 + $0x78] sm:$0xff]
    %v259 = vld [vmem:[%s6] sm:$0x1]
    %v261 = vperm.slane %v259, 0
    %263 = vmatpush.msra.mxu0 %v258
    %264 = vmatpush.msra.mxu0 %v257
    %265 = vmatpush.msra.mxu0 %v256
    %266 = vmatpush.msra.mxu0 %v255
    %267 = vmatpush.msra.mxu0 %v254
    %268 = vmatpush.msra.mxu0 %v253
    %269 = vmatpush.msra.mxu0 %v252
    %270 = vmatpush.msra.mxu0 %v251
    %271 = vmatpush.msra.mxu0 %v250
    %272 = vmatpush.msra.mxu0 %v249
    %273 = vmatpush.msra.mxu0 %v248
    %274 = vmatpush.msra.mxu0 %v247
    %275 = vmatpush.msra.mxu0 %v246
    %276 = vmatpush.msra.mxu0 %v245
    %277 = vmatpush.msra.mxu0 %v244
    %278 = vmatpush.msra.mxu0 %v243
    %279 = vmatmul.f32.gmra.mxu0 %v242
    %v280 = vpop.f32.mrf.mxu0
    %v281 = vadd.f32 %v261, %v280
    %282 = vdwg.mxu0
    %v283 = vld [vmem:[#allocation11] sm:$0xff]
    %v284 = vld [vmem:[#allocation11 + $0x8] sm:$0xff]
    %v285 = vld [vmem:[#allocation11 + $0x10] sm:$0xff]
    %v286 = vld [vmem:[#allocation11 + $0x18] sm:$0xff]
    %v287 = vld [vmem:[#allocation11 + $0x20] sm:$0xff]
    %v288 = vld [vmem:[#allocation11 + $0x28] sm:$0xff]
    %v289 = vld [vmem:[#allocation11 + $0x30] sm:$0xff]
    %v290 = vld [vmem:[#allocation11 + $0x38] sm:$0xff]
    %v291 = vld [vmem:[#allocation11 + $0x40] sm:$0xff]
    %v292 = vld [vmem:[#allocation11 + $0x48] sm:$0xff]
    %v293 = vld [vmem:[#allocation11 + $0x50] sm:$0xff]
    %v294 = vld [vmem:[#allocation11 + $0x58] sm:$0xff]
    %v295 = vld [vmem:[#allocation11 + $0x60] sm:$0xff]
    %v296 = vld [vmem:[#allocation11 + $0x68] sm:$0xff]
    %v297 = vld [vmem:[#allocation11 + $0x70] sm:$0xff]
    %v298 = vld [vmem:[#allocation11 + $0x78] sm:$0xff]
    %299 = vrot.lane.b32.xlu0 %v281, 127
    %v300 = vpop.permute.xlu0 %299
    %v301 = vsel %vm186, %v300, -inf
    %302 = vrot.lane.b32.xlu0 %v281, 1
    %v303 = vpop.permute.xlu0 %302
    %v304 = vsel %vm190, %v303, -inf
    %v305 = vmax.f32 %v301, %v304
    %v306 = vmax.f32 %v281, %v305
    %307 = vrot.lane.b32.xlu0 %v306, 126
    %v308 = vpop.permute.xlu0 %307
    %v309 = vsel %vm197, %v308, -inf
    %310 = vrot.lane.b32.xlu0 %v306, 2
    %v311 = vpop.permute.xlu0 %310
    %v312 = vsel %vm201, %v311, -inf
    %v313 = vmax.f32 %v309, %v312
    %v314 = vmax.f32 %v306, %v313
    %315 = vrot.lane.b32.xlu0 %v314, 124
    %v316 = vpop.permute.xlu0 %315
    %v317 = vsel %vm208, %v316, -inf
    %318 = vrot.lane.b32.xlu0 %v314, 4
    %v319 = vpop.permute.xlu0 %318
    %v320 = vsel %vm212, %v319, -inf
    %v321 = vmax.f32 %v317, %v320
    %v322 = vmax.f32 %v314, %v321
    %v323 = vsub.f32 %v281, %v322
    %v324 = vmul.f32 %v323, 1.442695
    %v325 = vpow.pop %v324
    %326 = vmatpush.msra.mxu0 %v298
    %327 = vmatpush.msra.mxu0 %v297
    %328 = vmatpush.msra.mxu0 %v296
    %329 = vmatpush.msra.mxu0 %v295
    %330 = vmatpush.msra.mxu0 %v294
    %331 = vmatpush.msra.mxu0 %v293
    %332 = vmatpush.msra.mxu0 %v292
    %333 = vmatpush.msra.mxu0 %v291
    %334 = vmatpush.msra.mxu0 %v290
    %335 = vmatpush.msra.mxu0 %v289
    %336 = vmatpush.msra.mxu0 %v288
    %337 = vmatpush.msra.mxu0 %v287
    %338 = vmatpush.msra.mxu0 %v286
    %339 = vmatpush.msra.mxu0 %v285
    %340 = vmatpush.msra.mxu0 %v284
    %341 = vmatpush.msra.mxu0 %v283
    %342 = vmatmul.f32.gmra.mxu0 %v325
    %v343 = vpop.f32.mrf.mxu0
    %v344 = vadd.f32 0.0, %v343
    %345 = vdwg.mxu0
    %v346 = vrcp.pop %v344
    %v347 = vmul.f32 %v325, %v346
    %348 = vst [vmem:[#allocation13] sm:$0xff] %v347
    // Predicated region
    $region58: #{tpu_custom_call.1} parent=1 // pred_check
      _
    $region59: #{tpu_custom_call.1} parent=1 // pred_check_branch
      %350 = sbr.rel (0) target = $region61
    $region60: #{tpu_custom_call.1} parent=1 // pred_region
      %352 = vsyncadd [#allocation4], 0
      %s354 = sshll.u32 [#allocation13], 4
      %s355 = int_to_ptr.vmem [resolvable:$true] %s354
      %s356 = sshll.u32 %s8, 4
      %s357 = int_to_ptr.hbm [resolvable:$true] %s356
      %359 = dma.vmem_to_hbm [thread:$0]  %s355, 128, %s357, [#allocation4]
    $region61: #{tpu_custom_call.1} parent=1 // pred_fallthru
      _
    // Predicated region
    $region62: #{tpu_custom_call.1} parent=1 // pred_check
      _
    $region63: #{tpu_custom_call.1} parent=1 // pred_check_branch
      %361 = sbr.rel (0) target = $region65
    $region64: #{tpu_custom_call.1} parent=1 // pred_region
      %363 = dma.done [#allocation4], 128
    $region65: #{tpu_custom_call.1} parent=1 // pred_fallthru
      _
    %364 = vsyncpa [#allocation3], 1
    %365 = vsyncpa [#allocation6], 1
    %366 = vsyncpa [#allocation9], 1
    %367 = vsyncpa [#allocation12], 1
    %368 = vsyncpa [#allocation4], 1

</llo_original>
